<compile_context>
chip_gen: v6e
topology: v6e:2x2x1
jax: 0.10.0
libtpu: 0.0.40
codegen_flags: <defaults>
</compile_context>

<pallas_src>
import functools

import jax
import jax.numpy as jnp
from jax.experimental import pallas as pl
from jax.experimental.pallas import tpu as pltpu

_LANE = 128


def mlp_kernel(x_ref, w1_ref, b1_ref, w2_ref, b2_ref, w3_ref, b3_ref, o_ref):
    """One batch tile. x_ref: (2, T) with batch on the lane axis -> o_ref (2, T)."""
    x = x_ref[...]                                       # (2, T)
    w1 = w1_ref[...]                                     # (32, 2)

    # Layer 1: Linear(2 -> 32) + ReLU.  K=2 -> VPU broadcast MACs (skip MXU).
    h1 = w1[:, 0:1] * x[0:1, :] + w1[:, 1:2] * x[1:2, :] + b1_ref[...]
    h1 = jnp.maximum(h1, 0.0)                            # (32, T)

    # Layer 2: Linear(32 -> 8) + ReLU (small MXU pass).
    h2 = jnp.dot(w2_ref[...], h1, preferred_element_type=jnp.float32)
    h2 = jnp.maximum(h2 + b2_ref[...], 0.0)              # (8, T)

    # Layer 3: Linear(8 -> 2).  Only 2 outputs / K=8 -> VPU broadcast MACs.
    w3 = w3_ref[...]                                     # (2, 8)
    h3 = b3_ref[...] + w3[:, 0:1] * h2[0:1, :]
    for k in range(1, 8):
        h3 = h3 + w3[:, k:k + 1] * h2[k:k + 1, :]
    o_ref[...] = h3.astype(o_ref.dtype)                  # (2, T)


def pack_params(params):
    """Pre-pack once: f32 weights in (out, in) layout, biases as (out, 1) columns."""
    w1, b1, w2, b2, w3, b3 = params
    f32 = jnp.float32
    return (w1.astype(f32), b1.reshape(-1, 1).astype(f32),
            w2.astype(f32), b2.reshape(-1, 1).astype(f32),
            w3.astype(f32), b3.reshape(-1, 1).astype(f32))


def _round_up(a, m):
    return ((a + m - 1) // m) * m


@functools.partial(jax.jit, static_argnames=("tile_n",))
def network_forward(data, packed_params, *, tile_n=2048):
    """Fused MLP forward. data: (N, 2) -> (N, 2) float32."""
    x = jnp.asarray(data, jnp.float32)
    n = x.shape[0]
    w1, b1, w2, b2, w3, b3 = packed_params

    # Lane-dense layout: batch on the last (128-lane) axis.
    x_t = x.T                                            # (2, N)
    tile = min(_round_up(tile_n, _LANE), _round_up(n, _LANE))
    n_pad = _round_up(n, tile)
    if n_pad != n:
        x_t = jnp.pad(x_t, ((0, 0), (0, n_pad - n)))

    const = lambda i: (0, 0)                             # weights/biases stay resident
    out_t = pl.pallas_call(
        mlp_kernel,
        out_shape=jax.ShapeDtypeStruct((2, n_pad), jnp.float32),
        grid=(n_pad // tile,),
        in_specs=[
            pl.BlockSpec((2, tile), lambda i: (0, i)),   # batch-sliced input tile
            pl.BlockSpec((32, 2), const),
            pl.BlockSpec((32, 1), const),
            pl.BlockSpec((8, 32), const),
            pl.BlockSpec((8, 1), const),
            pl.BlockSpec((2, 8), const),
            pl.BlockSpec((2, 1), const),
        ],
        out_specs=pl.BlockSpec((2, tile), lambda i: (0, i)),
        compiler_params=pltpu.CompilerParams(
            dimension_semantics=("parallel",)),
    )(x_t, w1, b1, w2, b2, w3, b3)

    return out_t[:, :n].T                                # back to (N, 2)


def init_params(key):
    """Deterministic init matching nn.Linear default (U(-1/sqrt(fan_in), +1/sqrt(fan_in)))."""
    dims = [(32, 2), (8, 32), (2, 8)]  # (out_features, in_features) per layer
    params = []
    for (out_f, in_f) in dims:
        key, kw, kb = jax.random.split(key, 3)
        bound = 1.0 / (in_f ** 0.5)
        w = jax.random.uniform(kw, (out_f, in_f), jnp.float32, -bound, bound)
        b = jax.random.uniform(kb, (out_f,), jnp.float32, -bound, bound)
        params.extend([w, b])
    return tuple(params)


def reference_forward(data, params):
    """Plain-JAX reference matching the PyTorch semantics."""
    w1, b1, w2, b2, w3, b3 = params
    x = jnp.asarray(data, dtype=jnp.float32)
    x = jnp.maximum(x @ w1.T + b1, 0.0)
    x = jnp.maximum(x @ w2.T + b2, 0.0)
    return x @ w3.T + b3


if __name__ == "__main__":
    key = jax.random.PRNGKey(0)
    key, kx1, kx2 = jax.random.split(key, 3)

    params = init_params(key)
    packed = pack_params(params)

    # Small batch of 2-D points, consistent with the module.
    data_small = jax.random.normal(kx1, (8, 2), jnp.float32)
    out_small = jax.block_until_ready(network_forward(data_small, packed))
    ref_small = reference_forward(data_small, params)
    assert out_small.shape == (8, 2)
    assert jnp.allclose(out_small, ref_small, atol=2e-5, rtol=2e-5), \
        "small-batch mismatch vs. reference"

    # Larger batch exercising a multi-step grid and lane-axis padding.
    data_big = jax.random.normal(kx2, (1000, 2), jnp.float32)
    out_big = jax.block_until_ready(network_forward(data_big, packed, tile_n=512))
    ref_big = reference_forward(data_big, params)
    assert out_big.shape == (1000, 2)
    assert jnp.allclose(out_big, ref_big, atol=2e-5, rtol=2e-5), \
        "large-batch mismatch vs. reference"

    print("KERNEL_OK")
</pallas_src>

<mosaic_0001>
module attributes {stable_mosaic.version = 11 : i64} {
  func.func @mlp_kernel(%arg0: i32, %arg1: memref<2x128xf32, #tpu.memory_space<vmem>>, %arg2: memref<32x2xf32, #tpu.memory_space<vmem>>, %arg3: memref<32x1xf32, #tpu.memory_space<vmem>>, %arg4: memref<8x32xf32, #tpu.memory_space<vmem>>, %arg5: memref<8x1xf32, #tpu.memory_space<vmem>>, %arg6: memref<2x8xf32, #tpu.memory_space<vmem>>, %arg7: memref<2x1xf32, #tpu.memory_space<vmem>>, %arg8: memref<2x128xf32, #tpu.memory_space<vmem>>) attributes {dimension_semantics = [#tpu.dimension_semantics<parallel>], iteration_bounds = array<i64: 1>, scalar_prefetch = 0 : i64, scratch_operands = 0 : i64, tpu.core_type = #tpu.core_type<tc>, window_params = [{transform_indices = @transform_0, window_bounds = array<i64: 2, 128>}, {pipeline_mode = #tpu.pipeline_mode<synchronous>, transform_indices = @transform_1, window_bounds = array<i64: 32, 2>}, {pipeline_mode = #tpu.pipeline_mode<synchronous>, transform_indices = @transform_2, window_bounds = array<i64: 32, 1>}, {pipeline_mode = #tpu.pipeline_mode<synchronous>, transform_indices = @transform_3, window_bounds = array<i64: 8, 32>}, {pipeline_mode = #tpu.pipeline_mode<synchronous>, transform_indices = @transform_4, window_bounds = array<i64: 8, 1>}, {pipeline_mode = #tpu.pipeline_mode<synchronous>, transform_indices = @transform_5, window_bounds = array<i64: 2, 8>}, {pipeline_mode = #tpu.pipeline_mode<synchronous>, transform_indices = @transform_6, window_bounds = array<i64: 2, 1>}, {transform_indices = @transform_7, window_bounds = array<i64: 2, 128>}]} {
    %c0 = arith.constant 0 : index
    %c0_0 = arith.constant 0 : index
    %0 = vector.load %arg1[%c0, %c0_0] : memref<2x128xf32, #tpu.memory_space<vmem>>, vector<2x128xf32>
    %c0_1 = arith.constant 0 : index
    %c0_2 = arith.constant 0 : index
    %1 = vector.load %arg2[%c0_1, %c0_2] : memref<32x2xf32, #tpu.memory_space<vmem>>, vector<32x2xf32>
    %2 = vector.extract_strided_slice %1 {offsets = [0, 0], sizes = [32, 1], strides = [1, 1]} : vector<32x2xf32> to vector<32x1xf32>
    %3 = vector.extract_strided_slice %0 {offsets = [0, 0], sizes = [1, 128], strides = [1, 1]} : vector<2x128xf32> to vector<1x128xf32>
    %4 = vector.broadcast %2 : vector<32x1xf32> to vector<32x128xf32>
    %5 = vector.broadcast %3 : vector<1x128xf32> to vector<32x128xf32>
    %6 = arith.mulf %4, %5 : vector<32x128xf32>
    %7 = vector.extract_strided_slice %1 {offsets = [0, 1], sizes = [32, 1], strides = [1, 1]} : vector<32x2xf32> to vector<32x1xf32>
    %8 = vector.extract_strided_slice %0 {offsets = [1, 0], sizes = [1, 128], strides = [1, 1]} : vector<2x128xf32> to vector<1x128xf32>
    %9 = vector.broadcast %7 : vector<32x1xf32> to vector<32x128xf32>
    %10 = vector.broadcast %8 : vector<1x128xf32> to vector<32x128xf32>
    %11 = arith.mulf %9, %10 : vector<32x128xf32>
    %12 = arith.addf %6, %11 : vector<32x128xf32>
    %c0_3 = arith.constant 0 : index
    %c0_4 = arith.constant 0 : index
    %13 = vector.load %arg3[%c0_3, %c0_4] : memref<32x1xf32, #tpu.memory_space<vmem>>, vector<32x1xf32>
    %14 = vector.broadcast %13 : vector<32x1xf32> to vector<32x128xf32>
    %15 = arith.addf %12, %14 : vector<32x128xf32>
    %cst = arith.constant 0.000000e+00 : f32
    %16 = vector.broadcast %cst : f32 to vector<32x128xf32>
    %17 = arith.maximumf %15, %16 : vector<32x128xf32>
    %c0_5 = arith.constant 0 : index
    %c0_6 = arith.constant 0 : index
    %18 = vector.load %arg4[%c0_5, %c0_6] : memref<8x32xf32, #tpu.memory_space<vmem>>, vector<8x32xf32>
    %cst_7 = arith.constant dense<0.000000e+00> : vector<8x128xf32>
    %19 = tpu.matmul %18, %17, %cst_7 {dimension_numbers = #tpu.dot_dimension_numbers<[1], [0], [0], [1], [0, 0, 1, 1], [], []>} : vector<8x32xf32>, vector<32x128xf32>, vector<8x128xf32> -> vector<8x128xf32>
    %c0_8 = arith.constant 0 : index
    %c0_9 = arith.constant 0 : index
    %20 = vector.load %arg5[%c0_8, %c0_9] : memref<8x1xf32, #tpu.memory_space<vmem>>, vector<8x1xf32>
    %21 = vector.broadcast %20 : vector<8x1xf32> to vector<8x128xf32>
    %22 = arith.addf %19, %21 : vector<8x128xf32>
    %cst_10 = arith.constant 0.000000e+00 : f32
    %23 = vector.broadcast %cst_10 : f32 to vector<8x128xf32>
    %24 = arith.maximumf %22, %23 : vector<8x128xf32>
    %c0_11 = arith.constant 0 : index
    %c0_12 = arith.constant 0 : index
    %25 = vector.load %arg6[%c0_11, %c0_12] : memref<2x8xf32, #tpu.memory_space<vmem>>, vector<2x8xf32>
    %c0_13 = arith.constant 0 : index
    %c0_14 = arith.constant 0 : index
    %26 = vector.load %arg7[%c0_13, %c0_14] : memref<2x1xf32, #tpu.memory_space<vmem>>, vector<2x1xf32>
    %27 = vector.extract_strided_slice %25 {offsets = [0, 0], sizes = [2, 1], strides = [1, 1]} : vector<2x8xf32> to vector<2x1xf32>
    %28 = vector.extract_strided_slice %24 {offsets = [0, 0], sizes = [1, 128], strides = [1, 1]} : vector<8x128xf32> to vector<1x128xf32>
    %29 = vector.broadcast %27 : vector<2x1xf32> to vector<2x128xf32>
    %30 = vector.broadcast %28 : vector<1x128xf32> to vector<2x128xf32>
    %31 = arith.mulf %29, %30 : vector<2x128xf32>
    %32 = vector.broadcast %26 : vector<2x1xf32> to vector<2x128xf32>
    %33 = arith.addf %32, %31 : vector<2x128xf32>
    %34 = vector.extract_strided_slice %25 {offsets = [0, 1], sizes = [2, 1], strides = [1, 1]} : vector<2x8xf32> to vector<2x1xf32>
    %35 = vector.extract_strided_slice %24 {offsets = [1, 0], sizes = [1, 128], strides = [1, 1]} : vector<8x128xf32> to vector<1x128xf32>
    %36 = vector.broadcast %34 : vector<2x1xf32> to vector<2x128xf32>
    %37 = vector.broadcast %35 : vector<1x128xf32> to vector<2x128xf32>
    %38 = arith.mulf %36, %37 : vector<2x128xf32>
    %39 = arith.addf %33, %38 : vector<2x128xf32>
    %40 = vector.extract_strided_slice %25 {offsets = [0, 2], sizes = [2, 1], strides = [1, 1]} : vector<2x8xf32> to vector<2x1xf32>
    %41 = vector.extract_strided_slice %24 {offsets = [2, 0], sizes = [1, 128], strides = [1, 1]} : vector<8x128xf32> to vector<1x128xf32>
    %42 = vector.broadcast %40 : vector<2x1xf32> to vector<2x128xf32>
    %43 = vector.broadcast %41 : vector<1x128xf32> to vector<2x128xf32>
    %44 = arith.mulf %42, %43 : vector<2x128xf32>
    %45 = arith.addf %39, %44 : vector<2x128xf32>
    %46 = vector.extract_strided_slice %25 {offsets = [0, 3], sizes = [2, 1], strides = [1, 1]} : vector<2x8xf32> to vector<2x1xf32>
    %47 = vector.extract_strided_slice %24 {offsets = [3, 0], sizes = [1, 128], strides = [1, 1]} : vector<8x128xf32> to vector<1x128xf32>
    %48 = vector.broadcast %46 : vector<2x1xf32> to vector<2x128xf32>
    %49 = vector.broadcast %47 : vector<1x128xf32> to vector<2x128xf32>
    %50 = arith.mulf %48, %49 : vector<2x128xf32>
    %51 = arith.addf %45, %50 : vector<2x128xf32>
    %52 = vector.extract_strided_slice %25 {offsets = [0, 4], sizes = [2, 1], strides = [1, 1]} : vector<2x8xf32> to vector<2x1xf32>
    %53 = vector.extract_strided_slice %24 {offsets = [4, 0], sizes = [1, 128], strides = [1, 1]} : vector<8x128xf32> to vector<1x128xf32>
    %54 = vector.broadcast %52 : vector<2x1xf32> to vector<2x128xf32>
    %55 = vector.broadcast %53 : vector<1x128xf32> to vector<2x128xf32>
    %56 = arith.mulf %54, %55 : vector<2x128xf32>
    %57 = arith.addf %51, %56 : vector<2x128xf32>
    %58 = vector.extract_strided_slice %25 {offsets = [0, 5], sizes = [2, 1], strides = [1, 1]} : vector<2x8xf32> to vector<2x1xf32>
    %59 = vector.extract_strided_slice %24 {offsets = [5, 0], sizes = [1, 128], strides = [1, 1]} : vector<8x128xf32> to vector<1x128xf32>
    %60 = vector.broadcast %58 : vector<2x1xf32> to vector<2x128xf32>
    %61 = vector.broadcast %59 : vector<1x128xf32> to vector<2x128xf32>
    %62 = arith.mulf %60, %61 : vector<2x128xf32>
    %63 = arith.addf %57, %62 : vector<2x128xf32>
    %64 = vector.extract_strided_slice %25 {offsets = [0, 6], sizes = [2, 1], strides = [1, 1]} : vector<2x8xf32> to vector<2x1xf32>
    %65 = vector.extract_strided_slice %24 {offsets = [6, 0], sizes = [1, 128], strides = [1, 1]} : vector<8x128xf32> to vector<1x128xf32>
    %66 = vector.broadcast %64 : vector<2x1xf32> to vector<2x128xf32>
    %67 = vector.broadcast %65 : vector<1x128xf32> to vector<2x128xf32>
    %68 = arith.mulf %66, %67 : vector<2x128xf32>
    %69 = arith.addf %63, %68 : vector<2x128xf32>
    %70 = vector.extract_strided_slice %25 {offsets = [0, 7], sizes = [2, 1], strides = [1, 1]} : vector<2x8xf32> to vector<2x1xf32>
    %71 = vector.extract_strided_slice %24 {offsets = [7, 0], sizes = [1, 128], strides = [1, 1]} : vector<8x128xf32> to vector<1x128xf32>
    %72 = vector.broadcast %70 : vector<2x1xf32> to vector<2x128xf32>
    %73 = vector.broadcast %71 : vector<1x128xf32> to vector<2x128xf32>
    %74 = arith.mulf %72, %73 : vector<2x128xf32>
    %75 = arith.addf %69, %74 : vector<2x128xf32>
    %c0_15 = arith.constant 0 : index
    %c0_16 = arith.constant 0 : index
    %76 = vector.load %arg8[%c0_15, %c0_16] : memref<2x128xf32, #tpu.memory_space<vmem>>, vector<2x128xf32>
    tpu.vector_store %arg8[%c0_15, %c0_16], %75 {strides = array<i32>} : memref<2x128xf32, #tpu.memory_space<vmem>>, vector<2x128xf32>,
    return
  }
  func.func @transform_0(%arg0: i32) -> (i32, i32) {
    %c0_i32 = arith.constant 0 : i32
    %c0_i32_0 = arith.constant 0 : i32
    return %c0_i32, %arg0 : i32, i32
  }
  func.func @transform_1(%arg0: i32) -> (i32, i32) {
    %c0_i32 = arith.constant 0 : i32
    %c0_i32_0 = arith.constant 0 : i32
    %c0_i32_1 = arith.constant 0 : i32
    return %c0_i32, %c0_i32_0 : i32, i32
  }
  func.func @transform_2(%arg0: i32) -> (i32, i32) {
    %c0_i32 = arith.constant 0 : i32
    %c0_i32_0 = arith.constant 0 : i32
    %c0_i32_1 = arith.constant 0 : i32
    return %c0_i32, %c0_i32_0 : i32, i32
  }
  func.func @transform_3(%arg0: i32) -> (i32, i32) {
    %c0_i32 = arith.constant 0 : i32
    %c0_i32_0 = arith.constant 0 : i32
    %c0_i32_1 = arith.constant 0 : i32
    return %c0_i32, %c0_i32_0 : i32, i32
  }
  func.func @transform_4(%arg0: i32) -> (i32, i32) {
    %c0_i32 = arith.constant 0 : i32
    %c0_i32_0 = arith.constant 0 : i32
    %c0_i32_1 = arith.constant 0 : i32
    return %c0_i32, %c0_i32_0 : i32, i32
  }
  func.func @transform_5(%arg0: i32) -> (i32, i32) {
    %c0_i32 = arith.constant 0 : i32
    %c0_i32_0 = arith.constant 0 : i32
    %c0_i32_1 = arith.constant 0 : i32
    return %c0_i32, %c0_i32_0 : i32, i32
  }
  func.func @transform_6(%arg0: i32) -> (i32, i32) {
    %c0_i32 = arith.constant 0 : i32
    %c0_i32_0 = arith.constant 0 : i32
    %c0_i32_1 = arith.constant 0 : i32
    return %c0_i32, %c0_i32_0 : i32, i32
  }
  func.func @transform_7(%arg0: i32) -> (i32, i32) {
    %c0_i32 = arith.constant 0 : i32
    %c0_i32_0 = arith.constant 0 : i32
    return %c0_i32, %arg0 : i32, i32
  }
}

</mosaic_0001>

<llo_original>
// kernel: network_forward.1
$region0: #{network_forward.1}
  #allocation0 [shape = 'u32[]', space=smem, size = 0x4, offset = 0x4, fixed_abs, tag = 'smem constant byte address 0x4 - core index']
  #allocation1 [shape = 'u32[144,128]{1,0:T(1,128)}', space=vmem, size = 0x12000, scoped, tag = 'internal scratch']
  %s0 = inlined_call_operand.vmem [shape: f32[2,128], index: 0, kind: input, shape index: {}]
  %s1 = inlined_call_operand.vmem [shape: f32[32,2], index: 1, kind: input, shape index: {}]
  %s2 = inlined_call_operand.vmem [shape: f32[32,1], index: 2, kind: input, shape index: {}]
  %s3 = inlined_call_operand.vmem [shape: f32[8,32], index: 3, kind: input, shape index: {}]
  %s4 = inlined_call_operand.vmem [shape: f32[8,1], index: 4, kind: input, shape index: {}]
  %s5 = inlined_call_operand.vmem [shape: f32[2,8], index: 5, kind: input, shape index: {}]
  %s6 = inlined_call_operand.vmem [shape: f32[2,1], index: 6, kind: input, shape index: {}]
  %s7 = inlined_call_operand.vmem [shape: f32[2,128], index: 7, kind: output, shape index: {}]
  %s8 = sld [smem:[#allocation0]]
  $region38: #{network_forward.1} parent=0
    _
  %s10 = ssub.s32 1, %s8
  %s11 = scalar_select 0, %s10, %s8
  // Predicated region
  $region2: #{network_forward.1} parent=0 // pred_check
    _
  $region3: #{network_forward.1} parent=0 // pred_check_branch
    %13 = sbr.rel (0) target = $region5
  $region4: #{network_forward.1} parent=0 // pred_region
    _
  $region5: #{network_forward.1} parent=0 // pred_fallthru
    _
  // Predicated region
  $region6: #{network_forward.1} parent=0 // pred_check
    _
  $region7: #{network_forward.1} parent=0 // pred_check_branch
    %15 = sbr.rel (0) target = $region9
  $region8: #{network_forward.1} parent=0 // pred_region
    _
  $region9: #{network_forward.1} parent=0 // pred_fallthru
    _
  // Predicated region
  $region10: #{network_forward.1} parent=0 // pred_check
    _
  $region11: #{network_forward.1} parent=0 // pred_check_branch
    %17 = sbr.rel (0) target = $region13
  $region12: #{network_forward.1} parent=0 // pred_region
    _
  $region13: #{network_forward.1} parent=0 // pred_fallthru
    _
  // Predicated region
  $region14: #{network_forward.1} parent=0 // pred_check
    _
  $region15: #{network_forward.1} parent=0 // pred_check_branch
    %19 = sbr.rel (0) target = $region17
  $region16: #{network_forward.1} parent=0 // pred_region
    _
  $region17: #{network_forward.1} parent=0 // pred_fallthru
    _
  // Predicated region
  $region18: #{network_forward.1} parent=0 // pred_check
    _
  $region19: #{network_forward.1} parent=0 // pred_check_branch
    %21 = sbr.rel (0) target = $region21
  $region20: #{network_forward.1} parent=0 // pred_region
    _
  $region21: #{network_forward.1} parent=0 // pred_fallthru
    _
  // Predicated region
  $region22: #{network_forward.1} parent=0 // pred_check
    _
  $region23: #{network_forward.1} parent=0 // pred_check_branch
    %23 = sbr.rel (0) target = $region25
  $region24: #{network_forward.1} parent=0 // pred_region
    _
  $region25: #{network_forward.1} parent=0 // pred_fallthru
    _
  // Predicated region
  $region26: #{network_forward.1} parent=0 // pred_check
    _
  $region27: #{network_forward.1} parent=0 // pred_check_branch
    %25 = sbr.rel (0) target = $region29
  $region28: #{network_forward.1} parent=0 // pred_region
    _
  $region29: #{network_forward.1} parent=0 // pred_fallthru
    _
  %v26 = vld [vmem:[%s0] sm:$0x3]
  %v27 = vld [vmem:[%s1] sm:$0xff]
  %v28 = vld [vmem:[%s1 + $0x8] sm:$0xff]
  %v29 = vld [vmem:[%s1 + $0x10] sm:$0xff]
  %v30 = vld [vmem:[%s1 + $0x18] sm:$0xff]
  %32 = vset.pattern.permute.xlu0 0
  %33 = vperm.xlu0 %32, %v27
  %v34 = vpop.permute.xlu0 %33
  %37 = vset.pattern.permute.xlu0 0
  %38 = vperm.xlu0 %37, %v28
  %v39 = vpop.permute.xlu0 %38
  %42 = vset.pattern.permute.xlu0 0
  %43 = vperm.xlu0 %42, %v29
  %v44 = vpop.permute.xlu0 %43
  %47 = vset.pattern.permute.xlu0 0
  %48 = vperm.xlu0 %47, %v30
  %v49 = vpop.permute.xlu0 %48
  %v51 = vlaneseq
  %v52 = vshrl.u32 %v51, 7
  %v53 = vsub.s32 0, %v52
  %v54 = vrot.slane %v26, %v53
  %v55 = vmul.f32 %v34, %v54
  %v56 = vmul.f32 %v39, %v54
  %v57 = vmul.f32 %v44, %v54
  %v58 = vmul.f32 %v49, %v54
  %59 = vset.pattern.permute.xlu0 1
  %60 = vperm.xlu0 %59, %v27
  %v61 = vpop.permute.xlu0 %60
  %63 = vset.pattern.permute.xlu0 1
  %64 = vperm.xlu0 %63, %v28
  %v65 = vpop.permute.xlu0 %64
  %67 = vset.pattern.permute.xlu0 1
  %68 = vperm.xlu0 %67, %v29
  %v69 = vpop.permute.xlu0 %68
  %71 = vset.pattern.permute.xlu0 1
  %72 = vperm.xlu0 %71, %v30
  %v73 = vpop.permute.xlu0 %72
  %v75 = vlaneseq
  %v76 = vshrl.u32 %v75, 7
  %v77 = vsub.s32 1, %v76
  %v78 = vrot.slane %v26, %v77
  %v79 = vmul.f32 %v61, %v78
  %v80 = vmul.f32 %v65, %v78
  %v81 = vmul.f32 %v69, %v78
  %v82 = vmul.f32 %v73, %v78
  %v83 = vadd.f32 %v55, %v79
  %v84 = vadd.f32 %v56, %v80
  %v85 = vadd.f32 %v57, %v81
  %v86 = vadd.f32 %v58, %v82
  %v87 = vld [vmem:[%s2] sm:$0xff]
  %v88 = vld [vmem:[%s2 + $0x8] sm:$0xff]
  %v89 = vld [vmem:[%s2 + $0x10] sm:$0xff]
  %v90 = vld [vmem:[%s2 + $0x18] sm:$0xff]
  %92 = vset.pattern.permute.xlu0 0
  %93 = vperm.xlu0 %92, %v87
  %v94 = vpop.permute.xlu0 %93
  %97 = vset.pattern.permute.xlu0 0
  %98 = vperm.xlu0 %97, %v88
  %v99 = vpop.permute.xlu0 %98
  %102 = vset.pattern.permute.xlu0 0
  %103 = vperm.xlu0 %102, %v89
  %v104 = vpop.permute.xlu0 %103
  %107 = vset.pattern.permute.xlu0 0
  %108 = vperm.xlu0 %107, %v90
  %v109 = vpop.permute.xlu0 %108
  %v111 = vadd.f32 %v83, %v94
  %v112 = vadd.f32 %v84, %v99
  %v113 = vadd.f32 %v85, %v104
  %v114 = vadd.f32 %v86, %v109
  %v115 = vmax.f32 %v111, 0.0
  %v116 = vmax.f32 %v112, 0.0
  %v117 = vmax.f32 %v113, 0.0
  %v118 = vmax.f32 %v114, 0.0
  %v119 = vld [vmem:[%s3] sm:$0xff]
  %v120 = vld [vmem:[%s4] sm:$0xff]
  %122 = vset.pattern.permute.xlu0 0
  %123 = vperm.xlu0 %122, %v120
  %v124 = vpop.permute.xlu0 %123
  %vm126 = vcmask 261120
  %v128 = vsel %vm126, %v119, 0
  %130 = vmatprep.subr.mxu0 0.0
  %131 = vmatpush1.msra.mxu0 0.0
  %132 = vmatprep.subr.mxu0 0.0
  %133 = vmatpush1.msra.mxu0 0.0
  %134 = vmatprep.subr.mxu0 0.0
  %135 = vmatpush1.msra.mxu0 0.0
  %136 = vmatprep.subr.mxu0 0.0
  %137 = vmatpush1.msra.mxu0 0.0
  %138 = vmatprep.subr.mxu0 0.0
  %139 = vmatpush1.msra.mxu0 0.0
  %140 = vmatprep.subr.mxu0 0.0
  %141 = vmatpush1.msra.mxu0 0.0
  %142 = vmatprep.subr.mxu0 0.0
  %143 = vmatpush1.msra.mxu0 0.0
  %144 = vmatprep.subr.mxu0 0.0
  %145 = vmatpush1.msra.mxu0 0.0
  %146 = vmatprep.subr.mxu0 0.0
  %147 = vmatpush1.msra.mxu0 0.0
  %148 = vmatprep.subr.mxu0 0.0
  %149 = vmatpush1.msra.mxu0 0.0
  %150 = vmatprep.subr.mxu0 0.0
  %151 = vmatpush1.msra.mxu0 0.0
  %152 = vmatprep.subr.mxu0 0.0
  %153 = vmatpush1.msra.mxu0 0.0
  %154 = vmatprep.subr.mxu0 0.0
  %155 = vmatpush1.msra.mxu0 %v118
  %156 = vmatprep.subr.mxu0 0.0
  %157 = vmatpush1.msra.mxu0 %v117
  %158 = vmatprep.subr.mxu0 0.0
  %159 = vmatpush1.msra.mxu0 %v116
  %160 = vmatprep.subr.mxu0 0.0
  %161 = vmatpush1.msra.mxu0 %v115
  %162 = vmatprep.subr.mxu0 0.0
  %163 = vmatpush2.msra.mxu0 0.0
  %164 = vmatprep.subr.mxu0 0.0
  %165 = vmatpush2.msra.mxu0 0.0
  %166 = vmatprep.subr.mxu0 0.0
  %167 = vmatpush2.msra.mxu0 0.0
  %168 = vmatprep.subr.mxu0 0.0
  %169 = vmatpush2.msra.mxu0 0.0
  %170 = vmatprep.subr.mxu0 0.0
  %171 = vmatpush2.msra.mxu0 0.0
  %172 = vmatprep.subr.mxu0 0.0
  %173 = vmatpush2.msra.mxu0 0.0
  %174 = vmatprep.subr.mxu0 0.0
  %175 = vmatpush2.msra.mxu0 0.0
  %176 = vmatprep.subr.mxu0 0.0
  %177 = vmatpush2.msra.mxu0 0.0
  %178 = vmatprep.subr.mxu0 0.0
  %179 = vmatpush2.msra.mxu0 0.0
  %180 = vmatprep.subr.mxu0 0.0
  %181 = vmatpush2.msra.mxu0 0.0
  %182 = vmatprep.subr.mxu0 0.0
  %183 = vmatpush2.msra.mxu0 0.0
  %184 = vmatprep.subr.mxu0 0.0
  %185 = vmatpush2.msra.mxu0 0.0
  %186 = vmatprep.subr.mxu0 0.0
  %187 = vmatpush2.msra.mxu0 0.0
  %188 = vmatprep.subr.mxu0 0.0
  %189 = vmatpush2.msra.mxu0 0.0
  %190 = vmatprep.subr.mxu0 0.0
  %191 = vmatpush2.msra.mxu0 0.0
  %192 = vmatprep.subr.mxu0 0.0
  %193 = vmatpush2.msra.mxu0 0.0
  %194 = vmatprep.mubr.f32.mxu0 0.0
  %195 = vmatmul.mubr.f32.gmra.mxu0 %v128
  %v196 = vpop.f32.mrf.mxu0
  %v197 = vadd.f32 %v124, %v196
  %v198 = vpop.f32.mrf.mxu0
  %199 = vdwg.mxu0
  %v200 = vmax.f32 %v197, 0.0
  %v201 = vld [vmem:[%s5] sm:$0x3]
  %v202 = vld [vmem:[%s6] sm:$0x3]
  %204 = vset.pattern.permute.xlu0 0
  %205 = vperm.xlu0 %204, %v201
  %v206 = vpop.permute.xlu0 %205
  %v208 = vlaneseq
  %v209 = vshrl.u32 %v208, 7
  %v210 = vsub.s32 0, %v209
  %v211 = vrot.slane %v200, %v210
  %v212 = vmul.f32 %v206, %v211
  %214 = vset.pattern.permute.xlu0 0
  %215 = vperm.xlu0 %214, %v202
  %v216 = vpop.permute.xlu0 %215
  %v218 = vadd.f32 %v216, %v212
  %219 = vset.pattern.permute.xlu0 1
  %220 = vperm.xlu0 %219, %v201
  %v221 = vpop.permute.xlu0 %220
  %v223 = vlaneseq
  %v224 = vshrl.u32 %v223, 7
  %v225 = vsub.s32 1, %v224
  %v226 = vrot.slane %v200, %v225
  %v227 = vmul.f32 %v221, %v226
  %v228 = vadd.f32 %v218, %v227
  %229 = vset.pattern.permute.xlu0 2
  %230 = vperm.xlu0 %229, %v201
  %v231 = vpop.permute.xlu0 %230
  %v233 = vlaneseq
  %v234 = vshrl.u32 %v233, 7
  %v235 = vsub.s32 2, %v234
  %v236 = vrot.slane %v200, %v235
  %v237 = vmul.f32 %v231, %v236
  %v238 = vadd.f32 %v228, %v237
  %239 = vset.pattern.permute.xlu0 3
  %240 = vperm.xlu0 %239, %v201
  %v241 = vpop.permute.xlu0 %240
  %v243 = vlaneseq
  %v244 = vshrl.u32 %v243, 7
  %v245 = vsub.s32 3, %v244
  %v246 = vrot.slane %v200, %v245
  %v247 = vmul.f32 %v241, %v246
  %v248 = vadd.f32 %v238, %v247
  %249 = vset.pattern.permute.xlu0 4
  %250 = vperm.xlu0 %249, %v201
  %v251 = vpop.permute.xlu0 %250
  %v253 = vlaneseq
  %v254 = vshrl.u32 %v253, 7
  %v255 = vsub.s32 4, %v254
  %v256 = vrot.slane %v200, %v255
  %v257 = vmul.f32 %v251, %v256
  %v258 = vadd.f32 %v248, %v257
  %259 = vset.pattern.permute.xlu0 5
  %260 = vperm.xlu0 %259, %v201
  %v261 = vpop.permute.xlu0 %260
  %v263 = vlaneseq
  %v264 = vshrl.u32 %v263, 7
  %v265 = vsub.s32 5, %v264
  %v266 = vrot.slane %v200, %v265
  %v267 = vmul.f32 %v261, %v266
  %v268 = vadd.f32 %v258, %v267
  %269 = vset.pattern.permute.xlu0 6
  %270 = vperm.xlu0 %269, %v201
  %v271 = vpop.permute.xlu0 %270
  %v273 = vlaneseq
  %v274 = vshrl.u32 %v273, 7
  %v275 = vsub.s32 6, %v274
  %v276 = vrot.slane %v200, %v275
  %v277 = vmul.f32 %v271, %v276
  %v278 = vadd.f32 %v268, %v277
  %279 = vset.pattern.permute.xlu0 7
  %280 = vperm.xlu0 %279, %v201
  %v281 = vpop.permute.xlu0 %280
  %v283 = vlaneseq
  %v284 = vshrl.u32 %v283, 7
  %v285 = vsub.s32 7, %v284
  %v286 = vrot.slane %v200, %v285
  %v287 = vmul.f32 %v281, %v286
  %v288 = vadd.f32 %v278, %v287
  %289 = vst [vmem:[%s7] sm:$0x3] %v288
  // Predicated region
  $region30: #{network_forward.1} parent=0 // pred_check
    _
  $region31: #{network_forward.1} parent=0 // pred_check_branch
    %291 = sbr.rel (0) target = $region33
  $region32: #{network_forward.1} parent=0 // pred_region
    _
  $region33: #{network_forward.1} parent=0 // pred_fallthru
    _
  // Predicated region
  $region34: #{network_forward.1} parent=0 // pred_check
    _
  $region35: #{network_forward.1} parent=0 // pred_check_branch
    %293 = sbr.rel (0) target = $region37
  $region36: #{network_forward.1} parent=0 // pred_region
    _
  $region37: #{network_forward.1} parent=0 // pred_fallthru
    _

</llo_original>
